<compile_context>
chip_gen: v5e
topology: v5e:2x2
jax: 0.10.0
libtpu: 0.0.40
codegen_flags: <defaults>
</compile_context>

<pallas_src>
import jax
import jax.numpy as jnp
from jax import lax
from jax.experimental import pallas as pl
from jax.experimental.pallas import tpu as pltpu


def _round_up(a, b):
    return -(-a // b) * b


def _vmem_capacity_bytes():
    try:
        return int(pltpu.get_tpu_info().vmem_capacity_bytes)
    except Exception:
        return 64 << 20  # conservative (v7x) fallback


# ----------------------- parameter prep (call once, hoisted) ------------------

def prepare_encoder_params(w1, b1, w2, b2, w3, b3, use_bf16=None):
    """Pad hidden/latent dims to 128 lanes and pick the matmul compute dtype.

    Call once, outside the forward hot path, so the pads/casts are not
    re-emitted (and the weights not re-read from HBM) on every call.
    """
    din, h1 = w1.shape
    h2 = w2.shape[1]
    latent = w3.shape[1]
    if use_bf16 is None:
        # bf16 only pays off for big layers; small encoders stay in f32 so the
        # rollout recurrence does not amplify bf16 rounding (|c1| can be > 1).
        use_bf16 = (din * h1) >= (1 << 18)
    wdt = jnp.bfloat16 if use_bf16 else jnp.float32
    h1p, h2p, lp = _round_up(h1, 128), _round_up(h2, 128), _round_up(latent, 128)

    def pad2(a, rows, cols):
        return jnp.pad(a, ((0, rows - a.shape[0]), (0, cols - a.shape[1])))

    return dict(
        w1=pad2(w1, din, h1p).astype(wdt),
        b1=pad2(b1.reshape(1, -1).astype(jnp.float32), 1, h1p),
        w2=pad2(w2, h1p, h2p).astype(wdt),
        b2=pad2(b2.reshape(1, -1).astype(jnp.float32), 1, h2p),
        w3=pad2(w3, h2p, lp).astype(wdt),
        b3=pad2(b3.reshape(1, -1).astype(jnp.float32), 1, lp),
        din=din, latent=latent, h1p=h1p, h2p=h2p, lp=lp, use_bf16=use_bf16,
    )


# ------------------------------ tiling / VMEM plan -----------------------------

def _plan_tiling(n_rows, din, h1p, h2p, lp, x_itemsize, use_bf16):
    cap = _vmem_capacity_bytes()
    budget = int(0.75 * cap)           # leave headroom for compiler scratch/sems
    w_item = 2 if use_bf16 else 4

    # Optional K (Din) reduction axis: only when the layer-1 operands are large
    # enough to pressure VMEM (matters first on v7x's 64 MiB).
    tk, nk = din, 1
    if din * h1p * w_item > (8 << 20):
        for cand in (1024, 512, 256, 128):
            if din % cand == 0:
                tk, nk = cand, din // cand
                break
        # TODO(synk): ragged Din (no 128-multiple divisor) stays un-K-tiled;
        #             pad Din (and the x columns) if this ever matters.

    def est(tn):
        n_pad = _round_up(n_rows, tn)
        return (2 * tn * tk * x_itemsize                      # x (double-buffered)
                + (2 if nk > 1 else 1) * tk * h1p * w_item    # w1
                + (h1p * h2p + h2p * lp) * w_item             # w2, w3 (Buffered(1))
                + (h1p + h2p + lp) * 4                        # biases
                + 6 * n_pad * lp * 4                          # resident z/z2/zr outputs
                + (tn * h1p * 4 if nk > 1 else 0)             # layer-1 accumulator
                + tn * (h1p + h2p + lp) * 4)                  # intermediates headroom

    # Big row tiles (~512) approach the HBM roofline; shrink only if VMEM-bound.
    tile_n = min(512, _round_up(n_rows, 8))
    while tile_n > 64 and est(tile_n) > budget:
        tile_n = max(64, _round_up(tile_n // 2, 8))
    # TODO(synk): for very large B*T the resident z/z2/zr buffers themselves
    #             outgrow VMEM; fall back to a separate rollout pass in that case.
    vmem_limit = min(budget, max(32 << 20, est(tile_n) + (2 << 20)))
    return tile_n, tk, nk, vmem_limit


# ------------------------------ fused kernel ----------------------------------

def _make_fused_kernel(batch, n_frames, tile_n, n_row_tiles, nk, use_bf16):
    compute_dt = jnp.bfloat16 if use_bf16 else jnp.float32
    two_t = 2 * n_frames
    n_steps = n_frames - 2

    def kernel(x_ref, w1_ref, b1_ref, w2_ref, b2_ref, w3_ref, b3_ref, coef_ref,
               z_ref, z2_ref, zr_ref, *scratch):
        i = pl.program_id(0)
        k = pl.program_id(1)

        # ---- encoder layer 1 (optionally K-tiled with an f32 accumulator) ----
        x = x_ref[...].astype(compute_dt)
        part = jnp.dot(x, w1_ref[...], preferred_element_type=jnp.float32)
        if nk > 1:
            acc_ref = scratch[0]

            @pl.when(k == 0)
            def _init():
                acc_ref[...] = jnp.zeros_like(acc_ref)

            acc_ref[...] += part

        # ---- layers 2/3 + lane-dense z row-tile store on the last K step ----
        @pl.when(k == nk - 1)
        def _tail():
            h1 = (acc_ref[...] if nk > 1 else part) + b1_ref[...]
            h1 = jnp.maximum(h1, 0.0).astype(compute_dt)
            h2 = jnp.dot(h1, w2_ref[...],
                         preferred_element_type=jnp.float32) + b2_ref[...]
            h2 = jnp.maximum(h2, 0.0).astype(compute_dt)
            p = jnp.dot(h2, w3_ref[...],
                        preferred_element_type=jnp.float32) + b3_ref[...]
            row0 = pl.multiple_of(i * tile_n, tile_n)
            z_ref[pl.ds(row0, tile_n), :] = p

        # ---- fused physics rollout epilogue on the very last grid step ----
        @pl.when(jnp.logical_and(i == n_row_tiles - 1, k == nk - 1))
        def _rollout():
            c1 = coef_ref[0]
            c0 = coef_ref[1]

            # Teacher-forced branch: row r encodes (b, t, mask) with
            # r = b*2T + 2t + mask, so shifting by 2 (4) rows is one (two)
            # frame(s) back within the same batch; rows with (r mod 2T) < 4 are
            # the two pass-through frames.  One vectorized slab, one store.
            z_all = z_ref[...]
            pred = (c1 * pltpu.roll(z_all, 2, axis=0)
                    + c0 * pltpu.roll(z_all, 4, axis=0))
            row = lax.broadcasted_iota(jnp.int32, z_all.shape, 0)
            zr_ref[...] = jnp.where((row % two_t) < 4, z_all, pred)

            # Autoregressive branch: carry (x0, x1) in registers; each step
            # stores only the new frame (2 rows x 128-lane-padded latent).
            @pl.loop(0, batch)
            def _per_batch(b):
                base = pl.multiple_of(b * two_t, 2)
                x0 = z_ref[pl.ds(base, 2), :]
                x1 = z_ref[pl.ds(base + 2, 2), :]
                z2_ref[pl.ds(base, 2), :] = x0
                z2_ref[pl.ds(base + 2, 2), :] = x1

                def step(t, carry):
                    y0, y1 = carry
                    y2 = c1 * y1 + c0 * y0
                    off = pl.multiple_of(base + 2 * (t + 2), 2)
                    z2_ref[pl.ds(off, 2), :] = y2
                    return y1, y2

                lax.fori_loop(0, n_steps, step, (x0, x1), unroll=True)

    return kernel


# --------------------------------- forward ------------------------------------

def endphys_dp_forward(x, enc_params, phys_params, dt):
    """x: [B, T, C, H, W] -> (z, z2_phys, z_renorm), each [B, T, 2*latent]."""
    B, T, C, H, W = x.shape
    din = H * W
    assert enc_params["din"] == din
    latent = enc_params["latent"]
    h1p, h2p, lp = enc_params["h1p"], enc_params["h2p"], enc_params["lp"]
    use_bf16 = enc_params["use_bf16"]

    frames = x if C == 2 else x[:, :, 0:2]
    # Free reshape (no copy): rows ordered (b, t, mask).  Dtype left as-is; the
    # kernel casts to the compute dtype, so a bf16 input stays bf16 over HBM.
    x_rows = frames.reshape(B * T * 2, din)
    n_rows = B * T * 2

    tile_n, tk, nk, vmem_limit = _plan_tiling(
        n_rows, din, h1p, h2p, lp, jnp.dtype(x_rows.dtype).itemsize, use_bf16)
    n_row_tiles = pl.cdiv(n_rows, tile_n)
    n_pad = n_row_tiles * tile_n
    if n_pad != n_rows:
        x_rows = jnp.pad(x_rows, ((0, n_pad - n_rows), (0, 0)))

    # Damped-oscillation step folded into a 2-tap recurrence
    #   z[t+2] = c1*z[t+1] + c0*z[t],  c1 = 2 - dt*g - dt^2*w^2,  c0 = dt*g - 1.
    dt = float(dt)
    omega = phys_params[0].astype(jnp.float32)
    gamma = phys_params[1].astype(jnp.float32)
    coef = jnp.stack([2.0 - dt * gamma - dt * dt * omega * omega,
                      dt * gamma - 1.0])

    def const_spec(shape):
        # Revisited every grid step -> single buffer is enough (saves VMEM).
        return pl.BlockSpec(shape, lambda i, k: (0, 0),
                            pipeline_mode=pl.Buffered(1))

    if nk > 1:
        w1_spec = pl.BlockSpec((tk, h1p), lambda i, k: (k, 0))
    else:
        w1_spec = const_spec((tk, h1p))

    kernel = _make_fused_kernel(B, T, tile_n, n_row_tiles, nk, use_bf16)
    out_sds = jax.ShapeDtypeStruct((n_pad, lp), jnp.float32)
    full_out = pl.BlockSpec((n_pad, lp), lambda i, k: (0, 0))

    z_p, z2_p, zr_p = pl.pallas_call(
        kernel,
        out_shape=(out_sds, out_sds, out_sds),
        grid=(n_row_tiles, nk),
        in_specs=[
            pl.BlockSpec((tile_n, tk), lambda i, k: (i, k)),   # x rows
            w1_spec,
            const_spec((1, h1p)),
            const_spec((h1p, h2p)),
            const_spec((1, h2p)),
            const_spec((h2p, lp)),
            const_spec((1, lp)),
            pl.BlockSpec(memory_space=pltpu.MemorySpace.SMEM),  # [c1, c0]
        ],
        out_specs=(full_out, full_out, full_out),
        scratch_shapes=([pltpu.VMEM((tile_n, h1p), jnp.float32)] if nk > 1 else []),
        compiler_params=pltpu.CompilerParams(
            dimension_semantics=("arbitrary", "arbitrary"),
            vmem_limit_bytes=vmem_limit),
    )(x_rows, enc_params["w1"], enc_params["b1"], enc_params["w2"],
      enc_params["b2"], enc_params["w3"], enc_params["b3"], coef)

    def unpack(a):
        return a[:n_rows, :latent].reshape(B, T, 2 * latent)

    return unpack(z_p), unpack(z2_p), unpack(zr_p)


# ------------------------- pure-JAX reference (checks) ------------------------

def reference_forward(x, enc_params, phys_params, dt):
    w1, b1, w2, b2, w3, b3 = enc_params
    omega, gamma = float(phys_params[0]), float(phys_params[1])
    B, T, C, Hh, Ww = x.shape

    def enc(m):  # m: [B, 1, H, W]
        h = m.reshape(B, Hh * Ww)
        h = jnp.maximum(h @ w1 + b1[0], 0.0)
        h = jnp.maximum(h @ w2 + b2[0], 0.0)
        return h @ w3 + b3[0]

    zs = []
    for i in range(T):
        f = x[:, i]
        p1 = enc(f[:, 0:1])
        p2 = enc(f[:, 1:2])
        zs.append(jnp.concatenate([p1, p2], axis=-1)[:, None, :])
    z = jnp.concatenate(zs, axis=1)

    def pmodel(zw):
        x0, x1 = zw[:, 0, :], zw[:, 1, :]
        v = (x1 - x0) / dt
        a = -(omega * omega) * x1 - gamma * v
        return (x1 + dt * v + dt * dt * a)[:, None, :]

    z_renorm = z[:, 0:2, :]
    z2_phys = z_renorm[:, 0:2, :]
    for i in range(T - 2):
        pred = pmodel(z2_phys[:, i:i + 2, :])
        pred2 = pmodel(z[:, i:i + 2, :])
        z2_phys = jnp.concatenate([z2_phys, pred], axis=1)
        z_renorm = jnp.concatenate([z_renorm, pred2], axis=1)
    return z, z2_phys, z_renorm


# ----------------------------------- main --------------------------------------

if __name__ == "__main__":
    B, T, C, Hs, Ws = 2, 8, 2, 8, 8          # x = [B, T, C, H, W]
    latent_dim, hidden, dt = 1, 32, 0.2
    Din = Hs * Ws

    key = jax.random.PRNGKey(0)
    kx, k1, k2, k3, k4, k5, k6 = jax.random.split(key, 7)
    x = jax.random.normal(kx, (B, T, C, Hs, Ws), dtype=jnp.float32)

    # deterministic encoder parameters (shared by mask1 and mask2, as in forward)
    w1 = 0.1 * jax.random.normal(k1, (Din, hidden), dtype=jnp.float32)
    b1 = 0.01 * jax.random.normal(k2, (1, hidden), dtype=jnp.float32)
    w2 = 0.1 * jax.random.normal(k3, (hidden, hidden), dtype=jnp.float32)
    b2 = 0.01 * jax.random.normal(k4, (1, hidden), dtype=jnp.float32)
    w3 = 0.1 * jax.random.normal(k5, (hidden, latent_dim), dtype=jnp.float32)
    b3 = 0.01 * jax.random.normal(k6, (1, latent_dim), dtype=jnp.float32)

    # deterministic physics parameters [omega, gamma] (plays the role of init_phys)
    phys_params = jnp.array([2.0, 0.5], dtype=jnp.float32)

    # Hoisted, one-time parameter prep (padding / dtype selection).
    enc_params = prepare_encoder_params(w1, b1, w2, b2, w3, b3)

    z, z2_phys, z_renorm = endphys_dp_forward(x, enc_params, phys_params, dt)
    jax.block_until_ready((z, z2_phys, z_renorm))

    z_r, z2_r, zr_r = reference_forward(x, (w1, b1, w2, b2, w3, b3), phys_params, dt)
    D = 2 * latent_dim
    assert z.shape == (B, T, D) and z2_phys.shape == (B, T, D) and z_renorm.shape == (B, T, D)
    # Small encoders run the MXU in f32 (precision knob), so only accumulation
    # order differs from the XLA reference.
    assert jnp.allclose(z, z_r, atol=1e-4, rtol=1e-4)
    assert jnp.allclose(z2_phys, z2_r, atol=1e-3, rtol=1e-3)
    assert jnp.allclose(z_renorm, zr_r, atol=1e-3, rtol=1e-3)

    print("KERNEL_OK")
</pallas_src>

<mosaic_0001>
module attributes {stable_mosaic.version = 11 : i64} {
  func.func @kernel(%arg0: i32, %arg1: i32, %arg2: memref<32x64xf32, #tpu.memory_space<vmem>>, %arg3: memref<64x128xf32, #tpu.memory_space<vmem>>, %arg4: memref<1x128xf32, #tpu.memory_space<vmem>>, %arg5: memref<128x128xf32, #tpu.memory_space<vmem>>, %arg6: memref<1x128xf32, #tpu.memory_space<vmem>>, %arg7: memref<128x128xf32, #tpu.memory_space<vmem>>, %arg8: memref<1x128xf32, #tpu.memory_space<vmem>>, %arg9: memref<2xf32, #tpu.memory_space<smem>>, %arg10: memref<32x128xf32, #tpu.memory_space<vmem>>, %arg11: memref<32x128xf32, #tpu.memory_space<vmem>>, %arg12: memref<32x128xf32, #tpu.memory_space<vmem>>) attributes {dimension_semantics = [#tpu.dimension_semantics<arbitrary>, #tpu.dimension_semantics<arbitrary>], iteration_bounds = array<i64: 1, 1>, scalar_prefetch = 0 : i64, scratch_operands = 0 : i64, tpu.core_type = #tpu.core_type<tc>, window_params = [{transform_indices = @transform_0, window_bounds = array<i64: 32, 64>}, {pipeline_mode = #tpu.pipeline_mode<synchronous>, transform_indices = @transform_1, window_bounds = array<i64: 64, 128>}, {pipeline_mode = #tpu.pipeline_mode<synchronous>, transform_indices = @transform_2, window_bounds = array<i64: 1, 128>}, {pipeline_mode = #tpu.pipeline_mode<synchronous>, transform_indices = @transform_3, window_bounds = array<i64: 128, 128>}, {pipeline_mode = #tpu.pipeline_mode<synchronous>, transform_indices = @transform_4, window_bounds = array<i64: 1, 128>}, {pipeline_mode = #tpu.pipeline_mode<synchronous>, transform_indices = @transform_5, window_bounds = array<i64: 128, 128>}, {pipeline_mode = #tpu.pipeline_mode<synchronous>, transform_indices = @transform_6, window_bounds = array<i64: 1, 128>}, {transform_indices = @transform_7, window_bounds = array<i64: 2>}, {pipeline_mode = #tpu.pipeline_mode<synchronous>, transform_indices = @transform_8, window_bounds = array<i64: 32, 128>}, {pipeline_mode = #tpu.pipeline_mode<synchronous>, transform_indices = @transform_9, window_bounds = array<i64: 32, 128>}, {pipeline_mode = #tpu.pipeline_mode<synchronous>, transform_indices = @transform_10, window_bounds = array<i64: 32, 128>}]} {
    %c0 = arith.constant 0 : index
    %c0_0 = arith.constant 0 : index
    %0 = vector.load %arg2[%c0, %c0_0] : memref<32x64xf32, #tpu.memory_space<vmem>>, vector<32x64xf32>
    %c0_1 = arith.constant 0 : index
    %c0_2 = arith.constant 0 : index
    %1 = vector.load %arg3[%c0_1, %c0_2] : memref<64x128xf32, #tpu.memory_space<vmem>>, vector<64x128xf32>
    %cst = arith.constant dense<0.000000e+00> : vector<32x128xf32>
    %2 = tpu.matmul %0, %1, %cst {dimension_numbers = #tpu.dot_dimension_numbers<[1], [0], [0], [1], [0, 0, 1, 1], [], []>} : vector<32x64xf32>, vector<64x128xf32>, vector<32x128xf32> -> vector<32x128xf32>
    %c0_i32 = arith.constant 0 : i32
    %3 = arith.cmpi eq, %arg1, %c0_i32 : i32
    %4 = arith.extui %3 : i1 to i32
    %c0_i32_3 = arith.constant 0 : i32
    %5 = arith.cmpi ne, %4, %c0_i32_3 : i32
    scf.if %5 {
      %c0_7 = arith.constant 0 : index
      %c0_8 = arith.constant 0 : index
      %11 = vector.load %arg4[%c0_7, %c0_8] : memref<1x128xf32, #tpu.memory_space<vmem>>, vector<1x128xf32>
      %12 = vector.broadcast %11 : vector<1x128xf32> to vector<32x128xf32>
      %13 = arith.addf %2, %12 : vector<32x128xf32>
      %cst_9 = arith.constant 0.000000e+00 : f32
      %14 = vector.broadcast %cst_9 : f32 to vector<32x128xf32>
      %15 = arith.maximumf %13, %14 : vector<32x128xf32>
      %c0_10 = arith.constant 0 : index
      %c0_11 = arith.constant 0 : index
      %16 = vector.load %arg5[%c0_10, %c0_11] : memref<128x128xf32, #tpu.memory_space<vmem>>, vector<128x128xf32>
      %cst_12 = arith.constant dense<0.000000e+00> : vector<32x128xf32>
      %17 = tpu.matmul %15, %16, %cst_12 {dimension_numbers = #tpu.dot_dimension_numbers<[1], [0], [0], [1], [0, 0, 1, 1], [], []>} : vector<32x128xf32>, vector<128x128xf32>, vector<32x128xf32> -> vector<32x128xf32>
      %c0_13 = arith.constant 0 : index
      %c0_14 = arith.constant 0 : index
      %18 = vector.load %arg6[%c0_13, %c0_14] : memref<1x128xf32, #tpu.memory_space<vmem>>, vector<1x128xf32>
      %19 = vector.broadcast %18 : vector<1x128xf32> to vector<32x128xf32>
      %20 = arith.addf %17, %19 : vector<32x128xf32>
      %cst_15 = arith.constant 0.000000e+00 : f32
      %21 = vector.broadcast %cst_15 : f32 to vector<32x128xf32>
      %22 = arith.maximumf %20, %21 : vector<32x128xf32>
      %c0_16 = arith.constant 0 : index
      %c0_17 = arith.constant 0 : index
      %23 = vector.load %arg7[%c0_16, %c0_17] : memref<128x128xf32, #tpu.memory_space<vmem>>, vector<128x128xf32>
      %cst_18 = arith.constant dense<0.000000e+00> : vector<32x128xf32>
      %24 = tpu.matmul %22, %23, %cst_18 {dimension_numbers = #tpu.dot_dimension_numbers<[1], [0], [0], [1], [0, 0, 1, 1], [], []>} : vector<32x128xf32>, vector<128x128xf32>, vector<32x128xf32> -> vector<32x128xf32>
      %c0_19 = arith.constant 0 : index
      %c0_20 = arith.constant 0 : index
      %25 = vector.load %arg8[%c0_19, %c0_20] : memref<1x128xf32, #tpu.memory_space<vmem>>, vector<1x128xf32>
      %26 = vector.broadcast %25 : vector<1x128xf32> to vector<32x128xf32>
      %27 = arith.addf %24, %26 : vector<32x128xf32>
      %c32_i32 = arith.constant 32 : i32
      %28 = arith.muli %arg0, %c32_i32 : i32
      %29 = tpu.assume_multiple %28, 32 : i32
      %30 = arith.index_cast %29 : i32 to index
      %c0_21 = arith.constant 0 : index
      %31 = vector.load %arg10[%30, %c0_21] : memref<32x128xf32, #tpu.memory_space<vmem>>, vector<32x128xf32>
      tpu.vector_store %arg10[%30, %c0_21], %27 {strides = array<i32>} : memref<32x128xf32, #tpu.memory_space<vmem>>, vector<32x128xf32>,
    } else {
    }
    %c0_i32_4 = arith.constant 0 : i32
    %6 = arith.cmpi eq, %arg0, %c0_i32_4 : i32
    %c0_i32_5 = arith.constant 0 : i32
    %7 = arith.cmpi eq, %arg1, %c0_i32_5 : i32
    %8 = arith.andi %6, %7 : i1
    %9 = arith.extui %8 : i1 to i32
    %c0_i32_6 = arith.constant 0 : i32
    %10 = arith.cmpi ne, %9, %c0_i32_6 : i32
    scf.if %10 {
      %c0_7 = arith.constant 0 : index
      %11 = memref.load %arg9[%c0_7] : memref<2xf32, #tpu.memory_space<smem>>
      %c1 = arith.constant 1 : index
      %12 = memref.load %arg9[%c1] : memref<2xf32, #tpu.memory_space<smem>>
      %c0_8 = arith.constant 0 : index
      %c0_9 = arith.constant 0 : index
      %13 = vector.load %arg10[%c0_8, %c0_9] : memref<32x128xf32, #tpu.memory_space<vmem>>, vector<32x128xf32>
      %c2_i32 = arith.constant 2 : i32
      %14 = tpu.dynamic_rotate %13 by %c2_i32 dim 0 : vector<32x128xf32>, i32 -> vector<32x128xf32>
      %15 = vector.broadcast %11 : f32 to vector<32x128xf32>
      %16 = arith.mulf %15, %14 : vector<32x128xf32>
      %c4_i32 = arith.constant 4 : i32
      %17 = tpu.dynamic_rotate %13 by %c4_i32 dim 0 : vector<32x128xf32>, i32 -> vector<32x128xf32>
      %18 = vector.broadcast %12 : f32 to vector<32x128xf32>
      %19 = arith.mulf %18, %17 : vector<32x128xf32>
      %20 = arith.addf %16, %19 : vector<32x128xf32>
      %21 = tpu.iota {dimensions = array<i32: 0>} : vector<32x128xi32>
      %c16_i32 = arith.constant 16 : i32
      %c0_i32_10 = arith.constant 0 : i32
      %22 = arith.cmpi eq, %c16_i32, %c0_i32_10 : i32
      %c1_i32 = arith.constant 1 : i32
      %23 = arith.select %22, %c1_i32, %c16_i32 : i32
      %24 = vector.broadcast %23 : i32 to vector<32x128xi32>
      %25 = arith.remsi %21, %24 : vector<32x128xi32>
      %c0_i32_11 = arith.constant 0 : i32
      %26 = vector.broadcast %c0_i32_11 : i32 to vector<32x128xi32>
      %27 = arith.cmpi ne, %25, %26 : vector<32x128xi32>
      %c0_i32_12 = arith.constant 0 : i32
      %28 = vector.broadcast %c0_i32_12 : i32 to vector<32x128xi32>
      %29 = arith.cmpi slt, %25, %28 : vector<32x128xi32>
      %c0_i32_13 = arith.constant 0 : i32
      %30 = arith.cmpi slt, %23, %c0_i32_13 : i32
      %31 = vector.broadcast %30 : i1 to vector<32x128xi1>
      %32 = vector.broadcast %31 : vector<32x128xi1> to vector<32x128xi1>
      %33 = arith.xori %29, %32 : vector<32x128xi1>
      %34 = arith.andi %33, %27 : vector<32x128xi1>
      %35 = vector.broadcast %23 : i32 to vector<32x128xi32>
      %36 = arith.addi %25, %35 : vector<32x128xi32>
      %37 = arith.select %34, %36, %25 : vector<32x128xi1>, vector<32x128xi32>
      %c4_i32_14 = arith.constant 4 : i32
      %38 = vector.broadcast %c4_i32_14 : i32 to vector<32x128xi32>
      %39 = arith.cmpi slt, %37, %38 : vector<32x128xi32>
      %40 = arith.select %39, %13, %20 : vector<32x128xi1>, vector<32x128xf32>
      %c0_15 = arith.constant 0 : index
      %c0_16 = arith.constant 0 : index
      %41 = vector.load %arg12[%c0_15, %c0_16] : memref<32x128xf32, #tpu.memory_space<vmem>>, vector<32x128xf32>
      tpu.vector_store %arg12[%c0_15, %c0_16], %40 {strides = array<i32>} : memref<32x128xf32, #tpu.memory_space<vmem>>, vector<32x128xf32>,
      %c0_i32_17 = arith.constant 0 : i32
      %c2_i32_18 = arith.constant 2 : i32
      %42 = arith.addi %c0_i32_17, %c2_i32_18 : i32
      %c1_i32_19 = arith.constant 1 : i32
      scf.for %arg13 = %c0_i32_17 to %42 step %c1_i32_19  : i32 {
        %c1_i32_21 = arith.constant 1 : i32
        %43 = arith.muli %arg13, %c1_i32_21 : i32
        %c0_i32_22 = arith.constant 0 : i32
        %44 = arith.addi %c0_i32_22, %43 : i32
        %c16_i32_23 = arith.constant 16 : i32
        %45 = arith.muli %44, %c16_i32_23 : i32
        %46 = tpu.assume_multiple %45, 2 : i32
        %47 = arith.index_cast %46 : i32 to index
        %c0_24 = arith.constant 0 : index
        %48 = vector.load %arg10[%47, %c0_24] : memref<32x128xf32, #tpu.memory_space<vmem>>, vector<2x128xf32>
        %c2_i32_25 = arith.constant 2 : i32
        %49 = arith.addi %46, %c2_i32_25 : i32
        %50 = arith.index_cast %49 : i32 to index
        %c0_26 = arith.constant 0 : index
        %51 = vector.load %arg10[%50, %c0_26] : memref<32x128xf32, #tpu.memory_space<vmem>>, vector<2x128xf32>
        %52 = arith.index_cast %46 : i32 to index
        %c0_27 = arith.constant 0 : index
        %53 = vector.load %arg11[%52, %c0_27] : memref<32x128xf32, #tpu.memory_space<vmem>>, vector<2x128xf32>
        tpu.vector_store %arg11[%52, %c0_27], %48 {strides = array<i32>} : memref<32x128xf32, #tpu.memory_space<vmem>>, vector<2x128xf32>,
        %c2_i32_28 = arith.constant 2 : i32
        %54 = arith.addi %46, %c2_i32_28 : i32
        %55 = arith.index_cast %54 : i32 to index
        %c0_29 = arith.constant 0 : index
        %56 = vector.load %arg11[%55, %c0_29] : memref<32x128xf32, #tpu.memory_space<vmem>>, vector<2x128xf32>
        tpu.vector_store %arg11[%55, %c0_29], %51 {strides = array<i32>} : memref<32x128xf32, #tpu.memory_space<vmem>>, vector<2x128xf32>,
        %c0_i32_30 = arith.constant 0 : i32
        %57 = vector.broadcast %11 : f32 to vector<2x128xf32>
        %58 = arith.mulf %57, %51 : vector<2x128xf32>
        %59 = vector.broadcast %12 : f32 to vector<2x128xf32>
        %60 = arith.mulf %59, %48 : vector<2x128xf32>
        %61 = arith.addf %58, %60 : vector<2x128xf32>
        %c2_i32_31 = arith.constant 2 : i32
        %62 = arith.addi %c0_i32_30, %c2_i32_31 : i32
        %c2_i32_32 = arith.constant 2 : i32
        %63 = arith.muli %c2_i32_32, %62 : i32
        %64 = arith.addi %46, %63 : i32
        %65 = tpu.assume_multiple %64, 2 : i32
        %66 = arith.index_cast %65 : i32 to index
        %c0_33 = arith.constant 0 : index
        %67 = vector.load %arg11[%66, %c0_33] : memref<32x128xf32, #tpu.memory_space<vmem>>, vector<2x128xf32>
        tpu.vector_store %arg11[%66, %c0_33], %61 {strides = array<i32>} : memref<32x128xf32, #tpu.memory_space<vmem>>, vector<2x128xf32>,
        %c1_i32_34 = arith.constant 1 : i32
        %68 = vector.broadcast %11 : f32 to vector<2x128xf32>
        %69 = arith.mulf %68, %61 : vector<2x128xf32>
        %70 = vector.broadcast %12 : f32 to vector<2x128xf32>
        %71 = arith.mulf %70, %51 : vector<2x128xf32>
        %72 = arith.addf %69, %71 : vector<2x128xf32>
        %c2_i32_35 = arith.constant 2 : i32
        %73 = arith.addi %c1_i32_34, %c2_i32_35 : i32
        %c2_i32_36 = arith.constant 2 : i32
        %74 = arith.muli %c2_i32_36, %73 : i32
        %75 = arith.addi %46, %74 : i32
        %76 = tpu.assume_multiple %75, 2 : i32
        %77 = arith.index_cast %76 : i32 to index
        %c0_37 = arith.constant 0 : index
        %78 = vector.load %arg11[%77, %c0_37] : memref<32x128xf32, #tpu.memory_space<vmem>>, vector<2x128xf32>
        tpu.vector_store %arg11[%77, %c0_37], %72 {strides = array<i32>} : memref<32x128xf32, #tpu.memory_space<vmem>>, vector<2x128xf32>,
        %c2_i32_38 = arith.constant 2 : i32
        %79 = vector.broadcast %11 : f32 to vector<2x128xf32>
        %80 = arith.mulf %79, %72 : vector<2x128xf32>
        %81 = vector.broadcast %12 : f32 to vector<2x128xf32>
        %82 = arith.mulf %81, %61 : vector<2x128xf32>
        %83 = arith.addf %80, %82 : vector<2x128xf32>
        %c2_i32_39 = arith.constant 2 : i32
        %84 = arith.addi %c2_i32_38, %c2_i32_39 : i32
        %c2_i32_40 = arith.constant 2 : i32
        %85 = arith.muli %c2_i32_40, %84 : i32
        %86 = arith.addi %46, %85 : i32
        %87 = tpu.assume_multiple %86, 2 : i32
        %88 = arith.index_cast %87 : i32 to index
        %c0_41 = arith.constant 0 : index
        %89 = vector.load %arg11[%88, %c0_41] : memref<32x128xf32, #tpu.memory_space<vmem>>, vector<2x128xf32>
        tpu.vector_store %arg11[%88, %c0_41], %83 {strides = array<i32>} : memref<32x128xf32, #tpu.memory_space<vmem>>, vector<2x128xf32>,
        %c3_i32 = arith.constant 3 : i32
        %90 = vector.broadcast %11 : f32 to vector<2x128xf32>
        %91 = arith.mulf %90, %83 : vector<2x128xf32>
        %92 = vector.broadcast %12 : f32 to vector<2x128xf32>
        %93 = arith.mulf %92, %72 : vector<2x128xf32>
        %94 = arith.addf %91, %93 : vector<2x128xf32>
        %c2_i32_42 = arith.constant 2 : i32
        %95 = arith.addi %c3_i32, %c2_i32_42 : i32
        %c2_i32_43 = arith.constant 2 : i32
        %96 = arith.muli %c2_i32_43, %95 : i32
        %97 = arith.addi %46, %96 : i32
        %98 = tpu.assume_multiple %97, 2 : i32
        %99 = arith.index_cast %98 : i32 to index
        %c0_44 = arith.constant 0 : index
        %100 = vector.load %arg11[%99, %c0_44] : memref<32x128xf32, #tpu.memory_space<vmem>>, vector<2x128xf32>
        tpu.vector_store %arg11[%99, %c0_44], %94 {strides = array<i32>} : memref<32x128xf32, #tpu.memory_space<vmem>>, vector<2x128xf32>,
        %c4_i32_45 = arith.constant 4 : i32
        %101 = vector.broadcast %11 : f32 to vector<2x128xf32>
        %102 = arith.mulf %101, %94 : vector<2x128xf32>
        %103 = vector.broadcast %12 : f32 to vector<2x128xf32>
        %104 = arith.mulf %103, %83 : vector<2x128xf32>
        %105 = arith.addf %102, %104 : vector<2x128xf32>
        %c2_i32_46 = arith.constant 2 : i32
        %106 = arith.addi %c4_i32_45, %c2_i32_46 : i32
        %c2_i32_47 = arith.constant 2 : i32
        %107 = arith.muli %c2_i32_47, %106 : i32
        %108 = arith.addi %46, %107 : i32
        %109 = tpu.assume_multiple %108, 2 : i32
        %110 = arith.index_cast %109 : i32 to index
        %c0_48 = arith.constant 0 : index
        %111 = vector.load %arg11[%110, %c0_48] : memref<32x128xf32, #tpu.memory_space<vmem>>, vector<2x128xf32>
        tpu.vector_store %arg11[%110, %c0_48], %105 {strides = array<i32>} : memref<32x128xf32, #tpu.memory_space<vmem>>, vector<2x128xf32>,
        %c5_i32 = arith.constant 5 : i32
        %112 = vector.broadcast %11 : f32 to vector<2x128xf32>
        %113 = arith.mulf %112, %105 : vector<2x128xf32>
        %114 = vector.broadcast %12 : f32 to vector<2x128xf32>
        %115 = arith.mulf %114, %94 : vector<2x128xf32>
        %116 = arith.addf %113, %115 : vector<2x128xf32>
        %c2_i32_49 = arith.constant 2 : i32
        %117 = arith.addi %c5_i32, %c2_i32_49 : i32
        %c2_i32_50 = arith.constant 2 : i32
        %118 = arith.muli %c2_i32_50, %117 : i32
        %119 = arith.addi %46, %118 : i32
        %120 = tpu.assume_multiple %119, 2 : i32
        %121 = arith.index_cast %120 : i32 to index
        %c0_51 = arith.constant 0 : index
        %122 = vector.load %arg11[%121, %c0_51] : memref<32x128xf32, #tpu.memory_space<vmem>>, vector<2x128xf32>
        tpu.vector_store %arg11[%121, %c0_51], %116 {strides = array<i32>} : memref<32x128xf32, #tpu.memory_space<vmem>>, vector<2x128xf32>,
        %c6_i32 = arith.constant 6 : i32
      }
      %c2_i32_20 = arith.constant 2 : i32
    } else {
    }
    return
  }
  func.func @transform_0(%arg0: i32, %arg1: i32) -> (i32, i32) {
    %c0_i32 = arith.constant 0 : i32
    return %arg0, %arg1 : i32, i32
  }
  func.func @transform_1(%arg0: i32, %arg1: i32) -> (i32, i32) {
    %c0_i32 = arith.constant 0 : i32
    %c0_i32_0 = arith.constant 0 : i32
    %c0_i32_1 = arith.constant 0 : i32
    return %c0_i32, %c0_i32_0 : i32, i32
  }
  func.func @transform_2(%arg0: i32, %arg1: i32) -> (i32, i32) {
    %c0_i32 = arith.constant 0 : i32
    %c0_i32_0 = arith.constant 0 : i32
    %c0_i32_1 = arith.constant 0 : i32
    return %c0_i32, %c0_i32_0 : i32, i32
  }
  func.func @transform_3(%arg0: i32, %arg1: i32) -> (i32, i32) {
    %c0_i32 = arith.constant 0 : i32
    %c0_i32_0 = arith.constant 0 : i32
    %c0_i32_1 = arith.constant 0 : i32
    return %c0_i32, %c0_i32_0 : i32, i32
  }
  func.func @transform_4(%arg0: i32, %arg1: i32) -> (i32, i32) {
    %c0_i32 = arith.constant 0 : i32
    %c0_i32_0 = arith.constant 0 : i32
    %c0_i32_1 = arith.constant 0 : i32
    return %c0_i32, %c0_i32_0 : i32, i32
  }
  func.func @transform_5(%arg0: i32, %arg1: i32) -> (i32, i32) {
    %c0_i32 = arith.constant 0 : i32
    %c0_i32_0 = arith.constant 0 : i32
    %c0_i32_1 = arith.constant 0 : i32
    return %c0_i32, %c0_i32_0 : i32, i32
  }
  func.func @transform_6(%arg0: i32, %arg1: i32) -> (i32, i32) {
    %c0_i32 = arith.constant 0 : i32
    %c0_i32_0 = arith.constant 0 : i32
    %c0_i32_1 = arith.constant 0 : i32
    return %c0_i32, %c0_i32_0 : i32, i32
  }
  func.func @transform_7(%arg0: i32, %arg1: i32) -> i32 {
    %c0_i32 = arith.constant 0 : i32
    %c0_i32_0 = arith.constant 0 : i32
    return %c0_i32 : i32
  }
  func.func @transform_8(%arg0: i32, %arg1: i32) -> (i32, i32) {
    %c0_i32 = arith.constant 0 : i32
    %c0_i32_0 = arith.constant 0 : i32
    %c0_i32_1 = arith.constant 0 : i32
    return %c0_i32, %c0_i32_0 : i32, i32
  }
  func.func @transform_9(%arg0: i32, %arg1: i32) -> (i32, i32) {
    %c0_i32 = arith.constant 0 : i32
    %c0_i32_0 = arith.constant 0 : i32
    %c0_i32_1 = arith.constant 0 : i32
    return %c0_i32, %c0_i32_0 : i32, i32
  }
  func.func @transform_10(%arg0: i32, %arg1: i32) -> (i32, i32) {
    %c0_i32 = arith.constant 0 : i32
    %c0_i32_0 = arith.constant 0 : i32
    %c0_i32_1 = arith.constant 0 : i32
    return %c0_i32, %c0_i32_0 : i32, i32
  }
}

</mosaic_0001>

<llo_original>
// kernel: tpu_custom_call.1
$region0: #{tpu_custom_call.1}
  #allocation0 [shape = 'u32[]', space=smem, size = 0x4, offset = 0x4, fixed_abs, tag = 'smem constant byte address 0x4 - core index']
  #allocation1 [shape = 'u32[72,128]{1,0:T(1,128)}', space=vmem, size = 0x9000, scoped, tag = 'internal scratch']
  %s0 = inlined_call_operand.hbm [shape: f32[32,64], index: 0, kind: input, shape index: {}]
  %s1 = inlined_call_operand.hbm [shape: f32[64,128], index: 1, kind: input, shape index: {}]
  %s2 = inlined_call_operand.vmem [shape: f32[1,128], index: 2, kind: input, shape index: {}]
  %s3 = inlined_call_operand.hbm [shape: f32[128,128], index: 3, kind: input, shape index: {}]
  %s4 = inlined_call_operand.vmem [shape: f32[1,128], index: 4, kind: input, shape index: {}]
  %s5 = inlined_call_operand.hbm [shape: f32[128,128], index: 5, kind: input, shape index: {}]
  %s6 = inlined_call_operand.vmem [shape: f32[1,128], index: 6, kind: input, shape index: {}]
  %s7 = inlined_call_operand.vmem [shape: f32[2], index: 7, kind: input, shape index: {}]
  %s8 = inlined_call_operand.hbm [shape: f32[32,128], index: 8, kind: output, shape index: {0}]
  %s9 = inlined_call_operand.hbm [shape: f32[32,128], index: 9, kind: output, shape index: {1}]
  %s10 = inlined_call_operand.hbm [shape: f32[32,128], index: 10, kind: output, shape index: {2}]
  %11 = xla_tuple %s8, %s9, %s10
  %s12 = sld [smem:[#allocation0]]
  $region93: #{tpu_custom_call.1} parent=0
    _
  %s14 = ssub.s32 1, %s12
  %s15 = scalar_select 0, %s14, %s12
  $region1: #{tpu_custom_call.1} parent=0
    #allocation2 [shape = 'u8[16384]{0}', space=vmem, size = 0x4000, scoped, tag = 'input window, operand 0, single buffered']
    #allocation3 [shape = 's32[1]{0}', space=sflag, size = 0x4, scoped, tag = 'scoped memory for tpu_custom_call.1']
    #allocation4 [shape = 's32[1]{0}', space=sflag, size = 0x4, scoped, tag = 'scoped memory for tpu_custom_call.1']
    #allocation5 [shape = 's32[1]{0}', space=sflag, size = 0x4, scoped, tag = 'scoped memory for tpu_custom_call.1']
    #allocation6 [shape = 'u8[32768]{0}', space=vmem, size = 0x8000, scoped, tag = 'input window, operand 1, single buffered']
    #allocation7 [shape = 's32[1]{0}', space=sflag, size = 0x4, scoped, tag = 'scoped memory for tpu_custom_call.1']
    #allocation8 [shape = 'u8[65536]{0}', space=vmem, size = 0x10000, scoped, tag = 'input window, operand 3, single buffered']
    #allocation9 [shape = 'u8[65536]{0}', space=vmem, size = 0x10000, scoped, tag = 'input window, operand 5, single buffered']
    #allocation10 [shape = 's32[1]{0}', space=sflag, size = 0x4, scoped, tag = 'scoped memory for tpu_custom_call.1']
    #allocation11 [shape = 'u8[512]{0}', space=smem, size = 0x200, scoped, tag = 'input window, operand 7, single buffered']
    #allocation12 [shape = 'u8[16384]{0}', space=vmem, size = 0x4000, scoped, tag = 'output window, operand 0, single buffered']
    #allocation13 [shape = 'u8[16384]{0}', space=vmem, size = 0x4000, scoped, tag = 'output window, operand 1, single buffered']
    #allocation14 [shape = 's32[1]{0}', space=sflag, size = 0x4, scoped, tag = 'scoped memory for tpu_custom_call.1']
    #allocation15 [shape = 'u8[16384]{0}', space=vmem, size = 0x4000, scoped, tag = 'output window, operand 2, single buffered']
    %16 = vsyncpa [#allocation3], 0
    %17 = vsyncpa [#allocation7], 0
    %18 = vsyncpa [#allocation10], 0
    %19 = vsyncpa [#allocation5], 0
    %20 = vsyncpa [#allocation4], 0
    %21 = vsyncpa [#allocation14], 0
    // Predicated region
    $region2: #{tpu_custom_call.1} parent=1 // pred_check
      _
    $region3: #{tpu_custom_call.1} parent=1 // pred_check_branch
      %23 = sbr.rel (0) target = $region5
    $region4: #{tpu_custom_call.1} parent=1 // pred_region
      %25 = vsyncadd [#allocation3], 0
      %s26 = sshll.u32 %s0, 4
      %s27 = int_to_ptr.hbm [resolvable:$true] %s26
      %s28 = sshll.u32 [#allocation2], 4
      %s29 = int_to_ptr.vmem [resolvable:$true] %s28
      %34 = dma.hbm_to_vmem [thread:$0]  %s27, 512, %s29, [#allocation3], 128, 128, 8
    $region5: #{tpu_custom_call.1} parent=1 // pred_fallthru
      _
    // Predicated region
    $region6: #{tpu_custom_call.1} parent=1 // pred_check
      _
    $region7: #{tpu_custom_call.1} parent=1 // pred_check_branch
      %36 = sbr.rel (0) target = $region9
    $region8: #{tpu_custom_call.1} parent=1 // pred_region
      %38 = vsyncadd [#allocation7], 0
      %s39 = sshll.u32 %s1, 4
      %s40 = int_to_ptr.hbm [resolvable:$true] %s39
      %s41 = sshll.u32 [#allocation6], 4
      %s42 = int_to_ptr.vmem [resolvable:$true] %s41
      %47 = dma.hbm_to_vmem [thread:$0]  %s40, 1024, %s42, [#allocation7], 128, 128, 8
    $region9: #{tpu_custom_call.1} parent=1 // pred_fallthru
      _
    // Predicated region
    $region10: #{tpu_custom_call.1} parent=1 // pred_check
      _
    $region11: #{tpu_custom_call.1} parent=1 // pred_check_branch
      %49 = sbr.rel (0) target = $region13
    $region12: #{tpu_custom_call.1} parent=1 // pred_region
      _
    $region13: #{tpu_custom_call.1} parent=1 // pred_fallthru
      _
    // Predicated region
    $region14: #{tpu_custom_call.1} parent=1 // pred_check
      _
    $region15: #{tpu_custom_call.1} parent=1 // pred_check_branch
      %51 = sbr.rel (0) target = $region17
    $region16: #{tpu_custom_call.1} parent=1 // pred_region
      %53 = vsyncadd [#allocation7], 0
      %s54 = sshll.u32 %s3, 4
      %s55 = int_to_ptr.hbm [resolvable:$true] %s54
      %s56 = sshll.u32 [#allocation8], 4
      %s57 = int_to_ptr.vmem [resolvable:$true] %s56
      %62 = dma.hbm_to_vmem [thread:$0]  %s55, 2048, %s57, [#allocation7], 128, 128, 8
    $region17: #{tpu_custom_call.1} parent=1 // pred_fallthru
      _
    // Predicated region
    $region18: #{tpu_custom_call.1} parent=1 // pred_check
      _
    $region19: #{tpu_custom_call.1} parent=1 // pred_check_branch
      %64 = sbr.rel (0) target = $region21
    $region20: #{tpu_custom_call.1} parent=1 // pred_region
      _
    $region21: #{tpu_custom_call.1} parent=1 // pred_fallthru
      _
    // Predicated region
    $region22: #{tpu_custom_call.1} parent=1 // pred_check
      _
    $region23: #{tpu_custom_call.1} parent=1 // pred_check_branch
      %66 = sbr.rel (0) target = $region25
    $region24: #{tpu_custom_call.1} parent=1 // pred_region
      %68 = vsyncadd [#allocation10], 0
      %s69 = sshll.u32 %s5, 4
      %s70 = int_to_ptr.hbm [resolvable:$true] %s69
      %s71 = sshll.u32 [#allocation9], 4
      %s72 = int_to_ptr.vmem [resolvable:$true] %s71
      %77 = dma.hbm_to_vmem [thread:$0]  %s70, 2048, %s72, [#allocation10], 128, 128, 8
    $region25: #{tpu_custom_call.1} parent=1 // pred_fallthru
      _
    // Predicated region
    $region26: #{tpu_custom_call.1} parent=1 // pred_check
      _
    $region27: #{tpu_custom_call.1} parent=1 // pred_check_branch
      %79 = sbr.rel (0) target = $region29
    $region28: #{tpu_custom_call.1} parent=1 // pred_region
      _
    $region29: #{tpu_custom_call.1} parent=1 // pred_fallthru
      _
    // Predicated region
    $region30: #{tpu_custom_call.1} parent=1 // pred_check
      _
    $region31: #{tpu_custom_call.1} parent=1 // pred_check_branch
      %81 = sbr.rel (0) target = $region33
    $region32: #{tpu_custom_call.1} parent=1 // pred_region
      %83 = vsyncadd [#allocation5], 0
      %s85 = sshll.u32 %s7, 4
      %s86 = int_to_ptr.vmem [resolvable:$true] %s85
      %88 = dma.vmem_to_smem %s86, 16, [#allocation11], [#allocation5]
    $region33: #{tpu_custom_call.1} parent=1 // pred_fallthru
      _
    // Predicated region
    $region34: #{tpu_custom_call.1} parent=1 // pred_check
      _
    $region35: #{tpu_custom_call.1} parent=1 // pred_check_branch
      %90 = sbr.rel (0) target = $region37
    $region36: #{tpu_custom_call.1} parent=1 // pred_region
      %92 = dma.done [#allocation3], 512
    $region37: #{tpu_custom_call.1} parent=1 // pred_fallthru
      _
    // Predicated region
    $region38: #{tpu_custom_call.1} parent=1 // pred_check
      _
    $region39: #{tpu_custom_call.1} parent=1 // pred_check_branch
      %94 = sbr.rel (0) target = $region41
    $region40: #{tpu_custom_call.1} parent=1 // pred_region
      %96 = dma.done [#allocation7], 1024
    $region41: #{tpu_custom_call.1} parent=1 // pred_fallthru
      _
    // Predicated region
    $region42: #{tpu_custom_call.1} parent=1 // pred_check
      _
    $region43: #{tpu_custom_call.1} parent=1 // pred_check_branch
      %98 = sbr.rel (0) target = $region45
    $region44: #{tpu_custom_call.1} parent=1 // pred_region
      %100 = dma.done [#allocation7], 2048
    $region45: #{tpu_custom_call.1} parent=1 // pred_fallthru
      _
    // Predicated region
    $region46: #{tpu_custom_call.1} parent=1 // pred_check
      _
    $region47: #{tpu_custom_call.1} parent=1 // pred_check_branch
      %102 = sbr.rel (0) target = $region49
    $region48: #{tpu_custom_call.1} parent=1 // pred_region
      %104 = dma.done [#allocation10], 2048
    $region49: #{tpu_custom_call.1} parent=1 // pred_fallthru
      _
    // Predicated region
    $region50: #{tpu_custom_call.1} parent=1 // pred_check
      _
    $region51: #{tpu_custom_call.1} parent=1 // pred_check_branch
      %106 = sbr.rel (0) target = $region53
    $region52: #{tpu_custom_call.1} parent=1 // pred_region
      %108 = dma.done [#allocation5], 16
    $region53: #{tpu_custom_call.1} parent=1 // pred_fallthru
      _
    %109 = sfence
    %v110 = vld [vmem:[#allocation2] sm:$0xff]
    %v111 = vld [vmem:[#allocation2 + $0x8] sm:$0xff]
    %v112 = vld [vmem:[#allocation2 + $0x10] sm:$0xff]
    %v113 = vld [vmem:[#allocation2 + $0x18] sm:$0xff]
    %v114 = vld [vmem:[#allocation6] sm:$0xff]
    %v115 = vld [vmem:[#allocation6 + $0x8] sm:$0xff]
    %v116 = vld [vmem:[#allocation6 + $0x10] sm:$0xff]
    %v117 = vld [vmem:[#allocation6 + $0x18] sm:$0xff]
    %v118 = vld [vmem:[#allocation6 + $0x20] sm:$0xff]
    %v119 = vld [vmem:[#allocation6 + $0x28] sm:$0xff]
    %v120 = vld [vmem:[#allocation6 + $0x30] sm:$0xff]
    %v121 = vld [vmem:[#allocation6 + $0x38] sm:$0xff]
    %p122 = scmp.eq.s32.totalorder 0, 0
    // Predicated region
    $region54: #{tpu_custom_call.1} parent=1 // pred_check
      %p123 = pneg %p122
    $region55: #{tpu_custom_call.1} parent=1 // pred_check_branch
      %125 = sbr.rel (%p123) target = $region57
    $region56: #{tpu_custom_call.1} parent=1 // pred_region
      %v126 = vld [vmem:[%s2] sm:$0x1]
      %v128 = vperm.slane %v126, 0
      %vm130 = vcmask 523264
      %v132 = vsel %vm130, %v110, 0
      %v135 = vsel %vm130, %v111, 0
      %v138 = vsel %vm130, %v112, 0
      %v141 = vsel %vm130, %v113, 0
      %143 = vmatpush.msra.mxu0 0.0
      %144 = vmatpush.msra.mxu0 0.0
      %145 = vmatpush.msra.mxu0 0.0
      %146 = vmatpush.msra.mxu0 0.0
      %147 = vmatpush.msra.mxu0 0.0
      %148 = vmatpush.msra.mxu0 0.0
      %149 = vmatpush.msra.mxu0 0.0
      %150 = vmatpush.msra.mxu0 0.0
      %151 = vmatpush.msra.mxu0 %v121
      %152 = vmatpush.msra.mxu0 %v120
      %153 = vmatpush.msra.mxu0 %v119
      %154 = vmatpush.msra.mxu0 %v118
      %155 = vmatpush.msra.mxu0 %v117
      %156 = vmatpush.msra.mxu0 %v116
      %157 = vmatpush.msra.mxu0 %v115
      %158 = vmatpush.msra.mxu0 %v114
      %159 = vmatmul.f32.gmra.mxu0 %v132
      %v160 = vpop.f32.mrf.mxu0
      %v161 = vadd.f32 %v128, %v160
      %162 = vmatmul.f32.gmra.mxu0 %v135
      %v163 = vpop.f32.mrf.mxu0
      %v164 = vadd.f32 %v128, %v163
      %165 = vmatmul.f32.gmra.mxu0 %v138
      %v166 = vpop.f32.mrf.mxu0
      %v167 = vadd.f32 %v128, %v166
      %168 = vmatmul.f32.gmra.mxu0 %v141
      %v169 = vpop.f32.mrf.mxu0
      %v170 = vadd.f32 %v128, %v169
      %171 = vdwg.mxu0
      %v172 = vmax.f32 %v161, 0.0
      %v173 = vmax.f32 %v164, 0.0
      %v174 = vmax.f32 %v167, 0.0
      %v175 = vmax.f32 %v170, 0.0
      %v176 = vld [vmem:[#allocation8] sm:$0xff]
      %v177 = vld [vmem:[#allocation8 + $0x8] sm:$0xff]
      %v178 = vld [vmem:[#allocation8 + $0x10] sm:$0xff]
      %v179 = vld [vmem:[#allocation8 + $0x18] sm:$0xff]
      %v180 = vld [vmem:[#allocation8 + $0x20] sm:$0xff]
      %v181 = vld [vmem:[#allocation8 + $0x28] sm:$0xff]
      %v182 = vld [vmem:[#allocation8 + $0x30] sm:$0xff]
      %v183 = vld [vmem:[#allocation8 + $0x38] sm:$0xff]
      %v184 = vld [vmem:[#allocation8 + $0x40] sm:$0xff]
      %v185 = vld [vmem:[#allocation8 + $0x48] sm:$0xff]
      %v186 = vld [vmem:[#allocation8 + $0x50] sm:$0xff]
      %v187 = vld [vmem:[#allocation8 + $0x58] sm:$0xff]
      %v188 = vld [vmem:[#allocation8 + $0x60] sm:$0xff]
      %v189 = vld [vmem:[#allocation8 + $0x68] sm:$0xff]
      %v190 = vld [vmem:[#allocation8 + $0x70] sm:$0xff]
      %v191 = vld [vmem:[#allocation8 + $0x78] sm:$0xff]
      %v192 = vld [vmem:[%s4] sm:$0x1]
      %v194 = vperm.slane %v192, 0
      %196 = vmatpush.msra.mxu0 %v191
      %197 = vmatpush.msra.mxu0 %v190
      %198 = vmatpush.msra.mxu0 %v189
      %199 = vmatpush.msra.mxu0 %v188
      %200 = vmatpush.msra.mxu0 %v187
      %201 = vmatpush.msra.mxu0 %v186
      %202 = vmatpush.msra.mxu0 %v185
      %203 = vmatpush.msra.mxu0 %v184
      %204 = vmatpush.msra.mxu0 %v183
      %205 = vmatpush.msra.mxu0 %v182
      %206 = vmatpush.msra.mxu0 %v181
      %207 = vmatpush.msra.mxu0 %v180
      %208 = vmatpush.msra.mxu0 %v179
      %209 = vmatpush.msra.mxu0 %v178
      %210 = vmatpush.msra.mxu0 %v177
      %211 = vmatpush.msra.mxu0 %v176
      %212 = vmatmul.f32.gmra.mxu0 %v172
      %v213 = vpop.f32.mrf.mxu0
      %v214 = vadd.f32 %v194, %v213
      %215 = vmatmul.f32.gmra.mxu0 %v173
      %v216 = vpop.f32.mrf.mxu0
      %v217 = vadd.f32 %v194, %v216
      %218 = vmatmul.f32.gmra.mxu0 %v174
      %v219 = vpop.f32.mrf.mxu0
      %v220 = vadd.f32 %v194, %v219
      %221 = vmatmul.f32.gmra.mxu0 %v175
      %v222 = vpop.f32.mrf.mxu0
      %v223 = vadd.f32 %v194, %v222
      %224 = vdwg.mxu0
      %v225 = vmax.f32 %v214, 0.0
      %v226 = vmax.f32 %v217, 0.0
      %v227 = vmax.f32 %v220, 0.0
      %v228 = vmax.f32 %v223, 0.0
      %v229 = vld [vmem:[#allocation9] sm:$0xff]
      %v230 = vld [vmem:[#allocation9 + $0x8] sm:$0xff]
      %v231 = vld [vmem:[#allocation9 + $0x10] sm:$0xff]
      %v232 = vld [vmem:[#allocation9 + $0x18] sm:$0xff]
      %v233 = vld [vmem:[#allocation9 + $0x20] sm:$0xff]
      %v234 = vld [vmem:[#allocation9 + $0x28] sm:$0xff]
      %v235 = vld [vmem:[#allocation9 + $0x30] sm:$0xff]
      %v236 = vld [vmem:[#allocation9 + $0x38] sm:$0xff]
      %v237 = vld [vmem:[#allocation9 + $0x40] sm:$0xff]
      %v238 = vld [vmem:[#allocation9 + $0x48] sm:$0xff]
      %v239 = vld [vmem:[#allocation9 + $0x50] sm:$0xff]
      %v240 = vld [vmem:[#allocation9 + $0x58] sm:$0xff]
      %v241 = vld [vmem:[#allocation9 + $0x60] sm:$0xff]
      %v242 = vld [vmem:[#allocation9 + $0x68] sm:$0xff]
      %v243 = vld [vmem:[#allocation9 + $0x70] sm:$0xff]
      %v244 = vld [vmem:[#allocation9 + $0x78] sm:$0xff]
      %v245 = vld [vmem:[%s6] sm:$0x1]
      %v247 = vperm.slane %v245, 0
      %249 = vmatpush.msra.mxu0 %v244
      %250 = vmatpush.msra.mxu0 %v243
      %251 = vmatpush.msra.mxu0 %v242
      %252 = vmatpush.msra.mxu0 %v241
      %253 = vmatpush.msra.mxu0 %v240
      %254 = vmatpush.msra.mxu0 %v239
      %255 = vmatpush.msra.mxu0 %v238
      %256 = vmatpush.msra.mxu0 %v237
      %257 = vmatpush.msra.mxu0 %v236
      %258 = vmatpush.msra.mxu0 %v235
      %259 = vmatpush.msra.mxu0 %v234
      %260 = vmatpush.msra.mxu0 %v233
      %261 = vmatpush.msra.mxu0 %v232
      %262 = vmatpush.msra.mxu0 %v231
      %263 = vmatpush.msra.mxu0 %v230
      %264 = vmatpush.msra.mxu0 %v229
      %265 = vmatmul.f32.gmra.mxu0 %v225
      %v266 = vpop.f32.mrf.mxu0
      %v267 = vadd.f32 %v247, %v266
      %268 = vmatmul.f32.gmra.mxu0 %v226
      %v269 = vpop.f32.mrf.mxu0
      %v270 = vadd.f32 %v247, %v269
      %271 = vmatmul.f32.gmra.mxu0 %v227
      %v272 = vpop.f32.mrf.mxu0
      %v273 = vadd.f32 %v247, %v272
      %274 = vmatmul.f32.gmra.mxu0 %v228
      %v275 = vpop.f32.mrf.mxu0
      %v276 = vadd.f32 %v247, %v275
      %277 = vdwg.mxu0
      %s278 = smul.u32 0, 32
      %s279 = scalar_lea.vmem [#allocation12], %s278
      %280 = vst [vmem:[%s279] sm:$0xff] %v267
      %281 = vst [vmem:[%s279 + $0x8] sm:$0xff] %v270
      %282 = vst [vmem:[%s279 + $0x10] sm:$0xff] %v273
      %283 = vst [vmem:[%s279 + $0x18] sm:$0xff] %v276
    $region57: #{tpu_custom_call.1} parent=1 // pred_fallthru
      _
    %p284 = scmp.eq.s32.totalorder 0, 0
    %p285 = pnand %p284, %p122
    %p286 = pneg %p285
    // Predicated region
    $region58: #{tpu_custom_call.1} parent=1 // pred_check
      _
    $region59: #{tpu_custom_call.1} parent=1 // pred_check_branch
      %288 = sbr.rel (%p285) target = $region61
    $region60: #{tpu_custom_call.1} parent=1 // pred_region
      %s289 = sld [smem:[#allocation11]]
      %s290 = sld [smem:[#allocation11 + $0x1]]
      %v291 = vld [vmem:[#allocation12] sm:$0xff]
      %v292 = vld [vmem:[#allocation12 + $0x8] sm:$0xff]
      %v293 = vld [vmem:[#allocation12 + $0x10] sm:$0xff]
      %v294 = vld [vmem:[#allocation12 + $0x18] sm:$0xff]
      %v295 = vrot.slane %v291, 6
      %v296 = vrot.slane %v292, 6
      %v297 = vrot.slane %v293, 6
      %v298 = vrot.slane %v294, 6
      %v299 = vlaneseq
      %v300 = vshrl.u32 %v299, 7
      %vm301 = vcmp.lt.s32.totalorder %v300, 2
      %v302 = vsel %vm301, %v297, %v298
      %v303 = vsel %vm301, %v296, %v297
      %v304 = vsel %vm301, %v295, %v296
      %v305 = vsel %vm301, %v298, %v295
      %v306 = vstv %s289
      %v307 = vmul.f32 %v306, %v305
      %v308 = vmul.f32 %v306, %v304
      %v309 = vmul.f32 %v306, %v303
      %v310 = vmul.f32 %v306, %v302
      %v311 = vrot.slane %v291, 4
      %v312 = vrot.slane %v292, 4
      %v313 = vrot.slane %v293, 4
      %v314 = vrot.slane %v294, 4
      %vm315 = vcmp.lt.s32.totalorder %v300, 4
      %v316 = vsel %vm315, %v313, %v314
      %v317 = vsel %vm315, %v312, %v313
      %v318 = vsel %vm315, %v311, %v312
      %v319 = vsel %vm315, %v314, %v311
      %v320 = vstv %s290
      %v321 = vmul.f32 %v320, %v319
      %v322 = vmul.f32 %v320, %v318
      %v323 = vmul.f32 %v320, %v317
      %v324 = vmul.f32 %v320, %v316
      %v325 = vadd.f32 %v307, %v321
      %v326 = vadd.f32 %v308, %v322
      %v327 = vadd.f32 %v309, %v323
      %v328 = vadd.f32 %v310, %v324
      %v329 = vadd.s32 %v300, 8
      %v330 = vadd.s32 %v300, 16
      %v331 = vadd.s32 %v300, 24
      %vm332 = vcmp.lt.s32.totalorder %v300, 0
      %v333 = vsub.s32 0, %v300
      %v334 = vsel %vm332, %v333, %v300
      %v335 = vshrl.u32 %v334, 4
      %v336 = vand.u32 %v334, 15
      %v337 = vsub.s32 0, %v336
      %v338 = vsel %vm332, %v337, %v336
      %vm339 = vcmp.lt.s32.totalorder %v329, 0
      %v340 = vsub.s32 0, %v329
      %v341 = vsel %vm339, %v340, %v329
      %v342 = vshrl.u32 %v341, 4
      %v343 = vand.u32 %v341, 15
      %v344 = vsub.s32 0, %v343
      %v345 = vsel %vm339, %v344, %v343
      %vm346 = vcmp.lt.s32.totalorder %v330, 0
      %v347 = vsub.s32 0, %v330
      %v348 = vsel %vm346, %v347, %v330
      %v349 = vshrl.u32 %v348, 4
      %v350 = vand.u32 %v348, 15
      %v351 = vsub.s32 0, %v350
      %v352 = vsel %vm346, %v351, %v350
      %vm353 = vcmp.lt.s32.totalorder %v331, 0
      %v354 = vsub.s32 0, %v331
      %v355 = vsel %vm353, %v354, %v331
      %v356 = vshrl.u32 %v355, 4
      %v357 = vand.u32 %v355, 15
      %v358 = vsub.s32 0, %v357
      %v359 = vsel %vm353, %v358, %v357
      %vm360 = vcmp.ne.s32.totalorder %v338, 0
      %vm361 = vcmp.ne.s32.totalorder %v345, 0
      %vm362 = vcmp.ne.s32.totalorder %v352, 0
      %vm363 = vcmp.ne.s32.totalorder %v359, 0
      %vm364 = vcmp.lt.s32.totalorder %v338, 0
      %vm365 = vcmp.lt.s32.totalorder %v345, 0
      %vm366 = vcmp.lt.s32.totalorder %v352, 0
      %vm367 = vcmp.lt.s32.totalorder %v359, 0
      %vm368 = vmand %vm364, %vm360
      %vm369 = vmand %vm365, %vm361
      %vm370 = vmand %vm366, %vm362
      %vm371 = vmand %vm367, %vm363
      %v372 = vadd.s32 %v338, 16
      %v373 = vadd.s32 %v345, 16
      %v374 = vadd.s32 %v352, 16
      %v375 = vadd.s32 %v359, 16
      %v376 = vsel %vm368, %v372, %v338
      %v377 = vsel %vm369, %v373, %v345
      %v378 = vsel %vm370, %v374, %v352
      %v379 = vsel %vm371, %v375, %v359
      %vm380 = vcmp.lt.s32.totalorder %v376, 4
      %vm381 = vcmp.lt.s32.totalorder %v377, 4
      %vm382 = vcmp.lt.s32.totalorder %v378, 4
      %vm383 = vcmp.lt.s32.totalorder %v379, 4
      %v384 = vsel %vm380, %v291, %v325
      %v385 = vsel %vm381, %v292, %v326
      %v386 = vsel %vm382, %v293, %v327
      %v387 = vsel %vm383, %v294, %v328
      %388 = vst [vmem:[#allocation15] sm:$0xff] %v384
      %389 = vst [vmem:[#allocation15 + $0x8] sm:$0xff] %v385
      %390 = vst [vmem:[#allocation15 + $0x10] sm:$0xff] %v386
      %391 = vst [vmem:[#allocation15 + $0x18] sm:$0xff] %v387
      loop: start=0, step=1, limit=2
      $region62: #{tpu_custom_call.1} parent=60 // loop_pre_header
        _
      $region63: #{tpu_custom_call.1} parent=60 // loop_header
        %s393 = sphi 0, %s397
        %p394 = scmp.ge.s32.totalorder %s393, 2
      $region64: #{tpu_custom_call.1} parent=60 // loop_header_branch
        %396 = sbr.rel (%p394) target = $region68
      $region65: #{tpu_custom_call.1} parent=60 // loop_body
        %s398 = smul.u32 %s393, 16
        %s399 = scalar_lea.vmem [#allocation12], %s398
        %v400 = vld [vmem:[%s399] sm:$0x3]
        %s401 = sadd.s32 %s398, 2
        %s402 = scalar_lea.vmem [#allocation12], %s401
        %v403 = vld [vmem:[%s402] sm:$0x3]
        %s404 = scalar_lea.vmem [#allocation13], %s398
        %405 = vst [vmem:[%s404] sm:$0x3] %v400
        %s406 = scalar_lea.vmem [#allocation13], %s401
        %407 = vst [vmem:[%s406] sm:$0x3] %v403
        %v408 = vmul.f32 %v306, %v403
        %v409 = vmul.f32 %v320, %v400
        %v410 = vadd.f32 %v408, %v409
        %s411 = sadd.s32 %s398, 4
        %s412 = scalar_lea.vmem [#allocation13], %s411
        %413 = vst [vmem:[%s412] sm:$0x3] %v410
        %v414 = vmul.f32 %v306, %v410
        %v415 = vmul.f32 %v320, %v403
        %v416 = vadd.f32 %v414, %v415
        %s417 = sadd.s32 %s398, 6
        %s418 = scalar_lea.vmem [#allocation13], %s417
        %419 = vst [vmem:[%s418] sm:$0x3] %v416
        %v420 = vmul.f32 %v306, %v416
        %v421 = vmul.f32 %v320, %v410
        %v422 = vadd.f32 %v420, %v421
        %s423 = sadd.s32 %s398, 8
        %s424 = scalar_lea.vmem [#allocation13], %s423
        %425 = vst [vmem:[%s424] sm:$0x3] %v422
        %v426 = vmul.f32 %v306, %v422
        %v427 = vmul.f32 %v320, %v416
        %v428 = vadd.f32 %v426, %v427
        %s429 = sadd.s32 %s398, 10
        %s430 = scalar_lea.vmem [#allocation13], %s429
        %431 = vst [vmem:[%s430] sm:$0x3] %v428
        %v432 = vmul.f32 %v306, %v428
        %v433 = vmul.f32 %v320, %v422
        %v434 = vadd.f32 %v432, %v433
        %s435 = sadd.s32 %s398, 12
        %s436 = scalar_lea.vmem [#allocation13], %s435
        %437 = vst [vmem:[%s436] sm:$0x3] %v434
        %v438 = vmul.f32 %v306, %v434
        %v439 = vmul.f32 %v320, %v428
        %v440 = vadd.f32 %v438, %v439
        %s441 = sadd.s32 %s398, 14
        %s442 = scalar_lea.vmem [#allocation13], %s441
        %443 = vst [vmem:[%s442] sm:$0x3] %v440
      $region66: #{tpu_custom_call.1} parent=60 // loop_footer
        %s397 = sadd.s32 1, %s393
      $region67: #{tpu_custom_call.1} parent=60 // loop_footer_branch
        %392 = sbr.rel target = $region63
      $region68: #{tpu_custom_call.1} parent=60 // loop_exit
        _
    $region61: #{tpu_custom_call.1} parent=1 // pred_fallthru
      _
    // Predicated region
    $region69: #{tpu_custom_call.1} parent=1 // pred_check
      _
    $region70: #{tpu_custom_call.1} parent=1 // pred_check_branch
      %445 = sbr.rel (0) target = $region72
    $region71: #{tpu_custom_call.1} parent=1 // pred_region
      %447 = vsyncadd [#allocation4], 0
      %s448 = sshll.u32 [#allocation12], 4
      %s449 = int_to_ptr.vmem [resolvable:$true] %s448
      %s450 = sshll.u32 %s8, 4
      %s451 = int_to_ptr.hbm [resolvable:$true] %s450
      %456 = dma.vmem_to_hbm [thread:$0]  %s449, 512, %s451, [#allocation4], 128, 128, 8
    $region72: #{tpu_custom_call.1} parent=1 // pred_fallthru
      _
    // Predicated region
    $region73: #{tpu_custom_call.1} parent=1 // pred_check
      _
    $region74: #{tpu_custom_call.1} parent=1 // pred_check_branch
      %458 = sbr.rel (0) target = $region76
    $region75: #{tpu_custom_call.1} parent=1 // pred_region
      %460 = vsyncadd [#allocation14], 0
      %s461 = sshll.u32 [#allocation13], 4
      %s462 = int_to_ptr.vmem [resolvable:$true] %s461
      %s463 = sshll.u32 %s9, 4
      %s464 = int_to_ptr.hbm [resolvable:$true] %s463
      %469 = dma.vmem_to_hbm [thread:$0]  %s462, 512, %s464, [#allocation14], 128, 128, 8
    $region76: #{tpu_custom_call.1} parent=1 // pred_fallthru
      _
    // Predicated region
    $region77: #{tpu_custom_call.1} parent=1 // pred_check
      _
    $region78: #{tpu_custom_call.1} parent=1 // pred_check_branch
      %471 = sbr.rel (0) target = $region80
    $region79: #{tpu_custom_call.1} parent=1 // pred_region
      %473 = vsyncadd [#allocation14], 0
      %s474 = sshll.u32 [#allocation15], 4
      %s475 = int_to_ptr.vmem [resolvable:$true] %s474
      %s476 = sshll.u32 %s10, 4
      %s477 = int_to_ptr.hbm [resolvable:$true] %s476
      %482 = dma.vmem_to_hbm [thread:$0]  %s475, 512, %s477, [#allocation14], 128, 128, 8
    $region80: #{tpu_custom_call.1} parent=1 // pred_fallthru
      _
    // Predicated region
    $region81: #{tpu_custom_call.1} parent=1 // pred_check
      _
    $region82: #{tpu_custom_call.1} parent=1 // pred_check_branch
      %484 = sbr.rel (0) target = $region84
    $region83: #{tpu_custom_call.1} parent=1 // pred_region
      %486 = dma.done [#allocation4], 512
    $region84: #{tpu_custom_call.1} parent=1 // pred_fallthru
      _
    // Predicated region
    $region85: #{tpu_custom_call.1} parent=1 // pred_check
      _
    $region86: #{tpu_custom_call.1} parent=1 // pred_check_branch
      %488 = sbr.rel (0) target = $region88
    $region87: #{tpu_custom_call.1} parent=1 // pred_region
      %490 = dma.done [#allocation14], 512
    $region88: #{tpu_custom_call.1} parent=1 // pred_fallthru
      _
    // Predicated region
    $region89: #{tpu_custom_call.1} parent=1 // pred_check
      _
    $region90: #{tpu_custom_call.1} parent=1 // pred_check_branch
      %492 = sbr.rel (0) target = $region92
    $region91: #{tpu_custom_call.1} parent=1 // pred_region
      %494 = dma.done [#allocation14], 512
    $region92: #{tpu_custom_call.1} parent=1 // pred_fallthru
      _
    %495 = vsyncpa [#allocation3], 1
    %496 = vsyncpa [#allocation7], 1
    %497 = vsyncpa [#allocation10], 1
    %498 = vsyncpa [#allocation4], 1
    %499 = vsyncpa [#allocation14], 1
    %500 = vsyncpa [#allocation5], 1

</llo_original>
